<compile_context>
chip_gen: v6e
topology: v6e:2x2x1
jax: 0.10.0
libtpu: 0.0.40
codegen_flags: <defaults>
</compile_context>

<pallas_src>
import jax
import jax.numpy as jnp
from jax.experimental import pallas as pl
from jax.experimental.pallas import tpu as pltpu

_LANE = 128
_SUBLANE = 8


def _round_up(n, m):
    return ((n + m - 1) // m) * m


def _vmem_capacity_bytes():
    """Physical per-core VMEM; conservative fallback if the query is unavailable."""
    try:
        return int(pltpu.get_tpu_info().vmem_capacity_bytes)
    except Exception:
        return 64 * 1024 * 1024  # every supported generation has >= 64 MiB


def _mlp_kernel(x_ref, w1_ref, b1_ref, w2_ref, b2_ref, o_ref):
    """Fused Linear -> ReLU -> Linear on one batch tile."""
    # Layer 0: Linear(d_in -> hidden); MXU matmul with f32 accumulation.
    h = jnp.dot(x_ref[...], w1_ref[...], preferred_element_type=jnp.float32)
    # Bias add + ReLU in f32 (v5e has no bf16 VPU).
    h = jnp.maximum(h + b1_ref[...], 0.0)
    # Layer 2: Linear(hidden -> d_out); cast the activation back to the MXU dtype.
    y = jnp.dot(h.astype(w2_ref.dtype), w2_ref[...],
                preferred_element_type=jnp.float32)
    o_ref[...] = (y + b2_ref[...]).astype(o_ref.dtype)


def prepare_params(w1, b1, w2, b2, compute_dtype=jnp.bfloat16):
    """One-time parameter prep (call once at setup, NOT per forward step).

    - transpose PyTorch (out, in) weights to (in, out) so the hot path is x @ W
    - zero-pad d_in and hidden dims to multiples of 128 (lane-dense MXU
      operands); the output feature dim is deliberately left unpadded
    - cast weights to the MXU compute dtype (bf16 by default); biases stay f32
      since accumulation / bias-add / ReLU are done in f32.
    Zero pad rows/cols + zero bias + ReLU(0)=0 keep the math exact.
    """
    w1 = jnp.asarray(w1, jnp.float32)
    b1 = jnp.asarray(b1, jnp.float32)
    w2 = jnp.asarray(w2, jnp.float32)
    b2 = jnp.asarray(b2, jnp.float32)

    d_hidden, d_in = w1.shape
    d_out = w2.shape[0]
    d_in_pad = _round_up(d_in, _LANE)
    h_pad = _round_up(d_hidden, _LANE)
    # NOTE: if a compute-bound config ever shows up (large d_in / d_hidden),
    # align these to 256 to fill the 2x256x256 MXU on v6e/v7x.

    w1_t = jnp.zeros((d_in_pad, h_pad), jnp.float32).at[:d_in, :d_hidden].set(w1.T)
    w2_t = jnp.zeros((h_pad, d_out), jnp.float32).at[:d_hidden, :].set(w2.T)
    b1_r = jnp.zeros((1, h_pad), jnp.float32).at[:, :d_hidden].set(b1[None, :])
    b2_r = b2[None, :]

    return {
        "w1": w1_t.astype(compute_dtype),
        "b1": b1_r,                        # f32: added after f32 accumulation
        "w2": w2_t.astype(compute_dtype),
        "b2": b2_r,                        # f32
        "d_in": d_in,
        "compute_dtype": jnp.dtype(compute_dtype),
    }


def my_sequential_forward(x, params, tile_b=None, out_dtype=jnp.float32):
    """Fused Linear -> ReLU -> Linear on prepared params.  x: (B, D_in)."""
    x = jnp.asarray(x)
    B, d_in = x.shape
    if d_in != params["d_in"]:
        raise ValueError(f"x feature dim {d_in} != prepared d_in {params['d_in']}")

    w1, b1, w2, b2 = params["w1"], params["b1"], params["w2"], params["b2"]
    compute_dtype = params["compute_dtype"]
    d_in_pad, h_pad = w1.shape
    d_out = w2.shape[1]

    # One fused cast (and, only if D_in isn't 128-aligned, a feature pad).
    # Ideally the caller already keeps activations in `compute_dtype`, making
    # this a no-op; there is NO batch-dimension pad copy in any case.
    x_c = x
    if d_in != d_in_pad:
        x_c = jnp.pad(x_c, ((0, 0), (0, d_in_pad - d_in)))
    if x_c.dtype != compute_dtype:
        x_c = x_c.astype(compute_dtype)

    # ---------------- generation-aware tile / VMEM budget --------------------
    vmem_cap = _vmem_capacity_bytes()
    vmem_limit = min((vmem_cap * 3) // 4, 110 * 1024 * 1024)  # ~48 MiB v7x, ~96 MiB v5e/v6e
    if tile_b is None:
        tile_b = 2048 if vmem_cap >= (100 << 20) else 1024

    x_itemsize = jnp.dtype(compute_dtype).itemsize
    out_itemsize = jnp.dtype(out_dtype).itemsize
    w_itemsize = w1.dtype.itemsize
    weight_bytes = (w1.size * w_itemsize + w2.size * w_itemsize
                    + b1.size * 4 + b2.size * 4)          # resident, single-buffered
    # Per-batch-row VMEM: double-buffered x / out tiles, plus the f32 hidden
    # intermediate (and its cast copy) that lives in compiler scratch.
    bytes_per_row = (2 * d_in_pad * x_itemsize
                     + 2 * d_out * out_itemsize
                     + h_pad * 4 + h_pad * w_itemsize)
    budget = (vmem_limit * 3) // 4 - weight_bytes          # headroom for internal scratch
    tile_cap = max(_SUBLANE, (budget // bytes_per_row) // _SUBLANE * _SUBLANE)
    tile_b = min(tile_b, tile_cap)
    # TODO(synk): for very wide hidden layers, add an "arbitrary" hidden-dim grid
    # axis with a VMEM accumulator instead of only shrinking tile_b.

    if B <= tile_b:
        tile_b = B                          # single full-array block, no masking
    else:
        tile_b = max(_SUBLANE, _round_up(tile_b, _SUBLANE))  # sublane-aligned tiles
    grid = (pl.cdiv(B, tile_b),)            # ragged last tile handled by masking

    flops = 2 * B * (d_in_pad * h_pad + h_pad * d_out)
    bytes_accessed = (x_c.size * x_itemsize + weight_bytes + B * d_out * out_itemsize)

    def _build_in_specs(single_buffer_weights):
        def resident(arr):
            # Full-array block, constant index -> stays resident in VMEM.
            if single_buffer_weights:
                # The block never changes, so one buffer suffices; halves the
                # weights' VMEM footprint (matters for big layers on v7x).
                return pl.BlockSpec(arr.shape, lambda i: (0, 0),
                                    pipeline_mode=pl.Buffered(1))
            return pl.BlockSpec(arr.shape, lambda i: (0, 0))
        # If profiling shows exposed DMA on tiny per-step compute, sweep
        # pipeline_mode=pl.Buffered(3) on this streamed x spec.
        return [pl.BlockSpec((tile_b, d_in_pad), lambda i: (i, 0)),   # streamed x
                resident(w1), resident(b1), resident(w2), resident(b2)]

    def _call(single_buffer_weights):
        return pl.pallas_call(
            _mlp_kernel,
            out_shape=jax.ShapeDtypeStruct((B, d_out), out_dtype),
            grid=grid,
            in_specs=_build_in_specs(single_buffer_weights),
            out_specs=pl.BlockSpec((tile_b, d_out), lambda i: (i, 0)),
            compiler_params=pltpu.CompilerParams(
                dimension_semantics=("parallel",),       # megacore sharding on v7x
                vmem_limit_bytes=int(vmem_limit),
            ),
            cost_estimate=pl.CostEstimate(
                flops=flops, bytes_accessed=bytes_accessed, transcendentals=0),
        )(x_c, w1, b1, w2, b2)

    try:
        return _call(single_buffer_weights=True)
    except Exception:
        # Fallback for environments where pipeline_mode=pl.Buffered(1) is not
        # supported on the top-level pallas_call pipeline.
        return _call(single_buffer_weights=False)


def _torch_linear_init(key, fan_out, fan_in, dtype=jnp.float32):
    """Deterministic init mimicking torch.nn.Linear: U(-1/sqrt(fan_in), 1/sqrt(fan_in))."""
    kw, kb = jax.random.split(key)
    bound = 1.0 / jnp.sqrt(jnp.asarray(fan_in, dtype))
    w = jax.random.uniform(kw, (fan_out, fan_in), dtype, -bound, bound)
    b = jax.random.uniform(kb, (fan_out,), dtype, -bound, bound)
    return w, b


if __name__ == "__main__":
    # Small shapes consistent with MySequential(Linear, ReLU, Linear).
    batch, d_in, d_hidden, d_out = 2, 128, 64, 32

    key = jax.random.PRNGKey(0)
    k_x, k_l1, k_l2 = jax.random.split(key, 3)

    x = jax.random.uniform(k_x, (batch, d_in), jnp.float32)
    w1, b1 = _torch_linear_init(k_l1, d_hidden, d_in)
    w2, b2 = _torch_linear_init(k_l2, d_out, d_hidden)

    # Reference: same semantics as the PyTorch forward (Linear -> ReLU -> Linear).
    ref = jnp.maximum(x @ w1.T + b1, 0.0) @ w2.T + b2

    # f32 MXU path — bit-faithful to the reference.
    params_f32 = prepare_params(w1, b1, w2, b2, compute_dtype=jnp.float32)
    out_f32 = jax.block_until_ready(my_sequential_forward(x, params_f32))
    assert out_f32.shape == (batch, d_out)
    assert jnp.allclose(out_f32, ref, atol=1e-5, rtol=1e-5)

    # Default (perf) path: bf16 activation/weight stream, f32 accumulation.
    params_bf16 = prepare_params(w1, b1, w2, b2)  # compute_dtype=bfloat16
    out_bf16 = jax.block_until_ready(my_sequential_forward(x, params_bf16))
    assert out_bf16.shape == (batch, d_out)
    assert jnp.allclose(out_bf16, ref, atol=5e-2, rtol=5e-2)

    print("KERNEL_OK")
</pallas_src>

<mosaic_0001>
module attributes {stable_mosaic.version = 11 : i64} {
  func.func @_mlp_kernel(%arg0: i32, %arg1: memref<2x128xf32, #tpu.memory_space<vmem>>, %arg2: memref<128x128xf32, #tpu.memory_space<vmem>>, %arg3: memref<1x128xf32, #tpu.memory_space<vmem>>, %arg4: memref<128x32xf32, #tpu.memory_space<vmem>>, %arg5: memref<1x32xf32, #tpu.memory_space<vmem>>, %arg6: memref<2x32xf32, #tpu.memory_space<vmem>>) attributes {dimension_semantics = [#tpu.dimension_semantics<parallel>], iteration_bounds = array<i64: 1>, scalar_prefetch = 0 : i64, scratch_operands = 0 : i64, tpu.core_type = #tpu.core_type<tc>, window_params = [{transform_indices = @transform_0, window_bounds = array<i64: 2, 128>}, {pipeline_mode = #tpu.pipeline_mode<synchronous>, transform_indices = @transform_1, window_bounds = array<i64: 128, 128>}, {pipeline_mode = #tpu.pipeline_mode<synchronous>, transform_indices = @transform_2, window_bounds = array<i64: 1, 128>}, {pipeline_mode = #tpu.pipeline_mode<synchronous>, transform_indices = @transform_3, window_bounds = array<i64: 128, 32>}, {pipeline_mode = #tpu.pipeline_mode<synchronous>, transform_indices = @transform_4, window_bounds = array<i64: 1, 32>}, {transform_indices = @transform_5, window_bounds = array<i64: 2, 32>}]} {
    %c0 = arith.constant 0 : index
    %c0_0 = arith.constant 0 : index
    %0 = vector.load %arg1[%c0, %c0_0] : memref<2x128xf32, #tpu.memory_space<vmem>>, vector<2x128xf32>
    %c0_1 = arith.constant 0 : index
    %c0_2 = arith.constant 0 : index
    %1 = vector.load %arg2[%c0_1, %c0_2] : memref<128x128xf32, #tpu.memory_space<vmem>>, vector<128x128xf32>
    %cst = arith.constant dense<0.000000e+00> : vector<2x128xf32>
    %2 = tpu.matmul %0, %1, %cst {dimension_numbers = #tpu.dot_dimension_numbers<[1], [0], [0], [1], [0, 0, 1, 1], [], []>} : vector<2x128xf32>, vector<128x128xf32>, vector<2x128xf32> -> vector<2x128xf32>
    %c0_3 = arith.constant 0 : index
    %c0_4 = arith.constant 0 : index
    %3 = vector.load %arg3[%c0_3, %c0_4] : memref<1x128xf32, #tpu.memory_space<vmem>>, vector<1x128xf32>
    %4 = vector.broadcast %3 : vector<1x128xf32> to vector<2x128xf32>
    %5 = arith.addf %2, %4 : vector<2x128xf32>
    %cst_5 = arith.constant 0.000000e+00 : f32
    %6 = vector.broadcast %cst_5 : f32 to vector<2x128xf32>
    %7 = arith.maximumf %5, %6 : vector<2x128xf32>
    %c0_6 = arith.constant 0 : index
    %c0_7 = arith.constant 0 : index
    %8 = vector.load %arg4[%c0_6, %c0_7] : memref<128x32xf32, #tpu.memory_space<vmem>>, vector<128x32xf32>
    %cst_8 = arith.constant dense<0.000000e+00> : vector<2x32xf32>
    %9 = tpu.matmul %7, %8, %cst_8 {dimension_numbers = #tpu.dot_dimension_numbers<[1], [0], [0], [1], [0, 0, 1, 1], [], []>} : vector<2x128xf32>, vector<128x32xf32>, vector<2x32xf32> -> vector<2x32xf32>
    %c0_9 = arith.constant 0 : index
    %c0_10 = arith.constant 0 : index
    %10 = vector.load %arg5[%c0_9, %c0_10] : memref<1x32xf32, #tpu.memory_space<vmem>>, vector<1x32xf32>
    %11 = vector.broadcast %10 : vector<1x32xf32> to vector<2x32xf32>
    %12 = arith.addf %9, %11 : vector<2x32xf32>
    %c0_11 = arith.constant 0 : index
    %c0_12 = arith.constant 0 : index
    %13 = vector.load %arg6[%c0_11, %c0_12] : memref<2x32xf32, #tpu.memory_space<vmem>>, vector<2x32xf32>
    tpu.vector_store %arg6[%c0_11, %c0_12], %12 {strides = array<i32>} : memref<2x32xf32, #tpu.memory_space<vmem>>, vector<2x32xf32>,
    return
  }
  func.func @transform_0(%arg0: i32) -> (i32, i32) {
    %c0_i32 = arith.constant 0 : i32
    %c0_i32_0 = arith.constant 0 : i32
    return %arg0, %c0_i32 : i32, i32
  }
  func.func @transform_1(%arg0: i32) -> (i32, i32) {
    %c0_i32 = arith.constant 0 : i32
    %c0_i32_0 = arith.constant 0 : i32
    %c0_i32_1 = arith.constant 0 : i32
    return %c0_i32, %c0_i32_0 : i32, i32
  }
  func.func @transform_2(%arg0: i32) -> (i32, i32) {
    %c0_i32 = arith.constant 0 : i32
    %c0_i32_0 = arith.constant 0 : i32
    %c0_i32_1 = arith.constant 0 : i32
    return %c0_i32, %c0_i32_0 : i32, i32
  }
  func.func @transform_3(%arg0: i32) -> (i32, i32) {
    %c0_i32 = arith.constant 0 : i32
    %c0_i32_0 = arith.constant 0 : i32
    %c0_i32_1 = arith.constant 0 : i32
    return %c0_i32, %c0_i32_0 : i32, i32
  }
  func.func @transform_4(%arg0: i32) -> (i32, i32) {
    %c0_i32 = arith.constant 0 : i32
    %c0_i32_0 = arith.constant 0 : i32
    %c0_i32_1 = arith.constant 0 : i32
    return %c0_i32, %c0_i32_0 : i32, i32
  }
  func.func @transform_5(%arg0: i32) -> (i32, i32) {
    %c0_i32 = arith.constant 0 : i32
    %c0_i32_0 = arith.constant 0 : i32
    return %arg0, %c0_i32 : i32, i32
  }
}

module attributes {stable_mosaic.version = 11 : i64} {
  func.func @_mlp_kernel(%arg0: i32, %arg1: memref<2x128xf32, #tpu.memory_space<vmem>>, %arg2: memref<128x128xf32, #tpu.memory_space<vmem>>, %arg3: memref<1x128xf32, #tpu.memory_space<vmem>>, %arg4: memref<128x32xf32, #tpu.memory_space<vmem>>, %arg5: memref<1x32xf32, #tpu.memory_space<vmem>>, %arg6: memref<2x32xf32, #tpu.memory_space<vmem>>) attributes {dimension_semantics = [#tpu.dimension_semantics<parallel>], iteration_bounds = array<i64: 1>, scalar_prefetch = 0 : i64, scratch_operands = 0 : i64, tpu.core_type = #tpu.core_type<tc>, window_params = [{transform_indices = @transform_0, window_bounds = array<i64: 2, 128>}, {pipeline_mode = #tpu.pipeline_mode<synchronous>, transform_indices = @transform_1, window_bounds = array<i64: 128, 128>}, {pipeline_mode = #tpu.pipeline_mode<synchronous>, transform_indices = @transform_2, window_bounds = array<i64: 1, 128>}, {pipeline_mode = #tpu.pipeline_mode<synchronous>, transform_indices = @transform_3, window_bounds = array<i64: 128, 32>}, {pipeline_mode = #tpu.pipeline_mode<synchronous>, transform_indices = @transform_4, window_bounds = array<i64: 1, 32>}, {transform_indices = @transform_5, window_bounds = array<i64: 2, 32>}]} {
    %c0 = arith.constant 0 : index
    %c0_0 = arith.constant 0 : index
    %0 = vector.load %arg1[%c0, %c0_0] : memref<2x128xf32, #tpu.memory_space<vmem>>, vector<2x128xf32>
    %c0_1 = arith.constant 0 : index
    %c0_2 = arith.constant 0 : index
    %1 = vector.load %arg2[%c0_1, %c0_2] : memref<128x128xf32, #tpu.memory_space<vmem>>, vector<128x128xf32>
    %cst = arith.constant dense<0.000000e+00> : vector<2x128xf32>
    %2 = tpu.matmul %0, %1, %cst {dimension_numbers = #tpu.dot_dimension_numbers<[1], [0], [0], [1], [0, 0, 1, 1], [], []>} : vector<2x128xf32>, vector<128x128xf32>, vector<2x128xf32> -> vector<2x128xf32>
    %c0_3 = arith.constant 0 : index
    %c0_4 = arith.constant 0 : index
    %3 = vector.load %arg3[%c0_3, %c0_4] : memref<1x128xf32, #tpu.memory_space<vmem>>, vector<1x128xf32>
    %4 = vector.broadcast %3 : vector<1x128xf32> to vector<2x128xf32>
    %5 = arith.addf %2, %4 : vector<2x128xf32>
    %cst_5 = arith.constant 0.000000e+00 : f32
    %6 = vector.broadcast %cst_5 : f32 to vector<2x128xf32>
    %7 = arith.maximumf %5, %6 : vector<2x128xf32>
    %c0_6 = arith.constant 0 : index
    %c0_7 = arith.constant 0 : index
    %8 = vector.load %arg4[%c0_6, %c0_7] : memref<128x32xf32, #tpu.memory_space<vmem>>, vector<128x32xf32>
    %cst_8 = arith.constant dense<0.000000e+00> : vector<2x32xf32>
    %9 = tpu.matmul %7, %8, %cst_8 {dimension_numbers = #tpu.dot_dimension_numbers<[1], [0], [0], [1], [0, 0, 1, 1], [], []>} : vector<2x128xf32>, vector<128x32xf32>, vector<2x32xf32> -> vector<2x32xf32>
    %c0_9 = arith.constant 0 : index
    %c0_10 = arith.constant 0 : index
    %10 = vector.load %arg5[%c0_9, %c0_10] : memref<1x32xf32, #tpu.memory_space<vmem>>, vector<1x32xf32>
    %11 = vector.broadcast %10 : vector<1x32xf32> to vector<2x32xf32>
    %12 = arith.addf %9, %11 : vector<2x32xf32>
    %c0_11 = arith.constant 0 : index
    %c0_12 = arith.constant 0 : index
    %13 = vector.load %arg6[%c0_11, %c0_12] : memref<2x32xf32, #tpu.memory_space<vmem>>, vector<2x32xf32>
    tpu.vector_store %arg6[%c0_11, %c0_12], %12 {strides = array<i32>} : memref<2x32xf32, #tpu.memory_space<vmem>>, vector<2x32xf32>,
    return
  }
  func.func @transform_0(%arg0: i32) -> (i32, i32) {
    %c0_i32 = arith.constant 0 : i32
    %c0_i32_0 = arith.constant 0 : i32
    return %arg0, %c0_i32 : i32, i32
  }
  func.func @transform_1(%arg0: i32) -> (i32, i32) {
    %c0_i32 = arith.constant 0 : i32
    %c0_i32_0 = arith.constant 0 : i32
    %c0_i32_1 = arith.constant 0 : i32
    return %c0_i32, %c0_i32_0 : i32, i32
  }
  func.func @transform_2(%arg0: i32) -> (i32, i32) {
    %c0_i32 = arith.constant 0 : i32
    %c0_i32_0 = arith.constant 0 : i32
    %c0_i32_1 = arith.constant 0 : i32
    return %c0_i32, %c0_i32_0 : i32, i32
  }
  func.func @transform_3(%arg0: i32) -> (i32, i32) {
    %c0_i32 = arith.constant 0 : i32
    %c0_i32_0 = arith.constant 0 : i32
    %c0_i32_1 = arith.constant 0 : i32
    return %c0_i32, %c0_i32_0 : i32, i32
  }
  func.func @transform_4(%arg0: i32) -> (i32, i32) {
    %c0_i32 = arith.constant 0 : i32
    %c0_i32_0 = arith.constant 0 : i32
    %c0_i32_1 = arith.constant 0 : i32
    return %c0_i32, %c0_i32_0 : i32, i32
  }
  func.func @transform_5(%arg0: i32) -> (i32, i32) {
    %c0_i32 = arith.constant 0 : i32
    %c0_i32_0 = arith.constant 0 : i32
    return %arg0, %c0_i32 : i32, i32
  }
}

</mosaic_0001>

<llo_original>
// kernel: tpu_custom_call.1
$region0: #{tpu_custom_call.1}
  #allocation0 [shape = 'u32[]', space=smem, size = 0x4, offset = 0x4, fixed_abs, tag = 'smem constant byte address 0x4 - core index']
  #allocation1 [shape = 'u32[144,128]{1,0:T(1,128)}', space=vmem, size = 0x12000, scoped, tag = 'internal scratch']
  %s0 = inlined_call_operand.vmem [shape: f32[2,128], index: 0, kind: input, shape index: {}]
  %s1 = inlined_call_operand.vmem [shape: f32[128,128], index: 1, kind: input, shape index: {}]
  %s2 = inlined_call_operand.vmem [shape: f32[1,128], index: 2, kind: input, shape index: {}]
  %s3 = inlined_call_operand.vmem [shape: f32[128,32], index: 3, kind: input, shape index: {}]
  %s4 = inlined_call_operand.vmem [shape: f32[1,32], index: 4, kind: input, shape index: {}]
  %s5 = inlined_call_operand.hbm [shape: f32[2,32], index: 5, kind: output, shape index: {}]
  %s6 = sld [smem:[#allocation0]]
  $region30: #{tpu_custom_call.1} parent=0
    _
  %s8 = ssub.s32 1, %s6
  %s9 = scalar_select 0, %s8, %s6
  $region1: #{tpu_custom_call.1} parent=0
    #allocation2 [shape = 'u8[1024]{0}', space=vmem, size = 0x400, scoped, tag = 'output window, operand 0, single buffered']
    #allocation3 [shape = 's32[1]{0}', space=sflag, size = 0x4, scoped, tag = 'scoped memory for tpu_custom_call.1']
    %10 = vsyncpa [#allocation3], 0
    // Predicated region
    $region2: #{tpu_custom_call.1} parent=1 // pred_check
      _
    $region3: #{tpu_custom_call.1} parent=1 // pred_check_branch
      %12 = sbr.rel (0) target = $region5
    $region4: #{tpu_custom_call.1} parent=1 // pred_region
      _
    $region5: #{tpu_custom_call.1} parent=1 // pred_fallthru
      _
    // Predicated region
    $region6: #{tpu_custom_call.1} parent=1 // pred_check
      _
    $region7: #{tpu_custom_call.1} parent=1 // pred_check_branch
      %14 = sbr.rel (0) target = $region9
    $region8: #{tpu_custom_call.1} parent=1 // pred_region
      _
    $region9: #{tpu_custom_call.1} parent=1 // pred_fallthru
      _
    // Predicated region
    $region10: #{tpu_custom_call.1} parent=1 // pred_check
      _
    $region11: #{tpu_custom_call.1} parent=1 // pred_check_branch
      %16 = sbr.rel (0) target = $region13
    $region12: #{tpu_custom_call.1} parent=1 // pred_region
      _
    $region13: #{tpu_custom_call.1} parent=1 // pred_fallthru
      _
    // Predicated region
    $region14: #{tpu_custom_call.1} parent=1 // pred_check
      _
    $region15: #{tpu_custom_call.1} parent=1 // pred_check_branch
      %18 = sbr.rel (0) target = $region17
    $region16: #{tpu_custom_call.1} parent=1 // pred_region
      _
    $region17: #{tpu_custom_call.1} parent=1 // pred_fallthru
      _
    // Predicated region
    $region18: #{tpu_custom_call.1} parent=1 // pred_check
      _
    $region19: #{tpu_custom_call.1} parent=1 // pred_check_branch
      %20 = sbr.rel (0) target = $region21
    $region20: #{tpu_custom_call.1} parent=1 // pred_region
      _
    $region21: #{tpu_custom_call.1} parent=1 // pred_fallthru
      _
    %v21 = vld [vmem:[%s0] sm:$0x3]
    %v22 = vld [vmem:[%s1] sm:$0xff]
    %v23 = vld [vmem:[%s1 + $0x8] sm:$0xff]
    %v24 = vld [vmem:[%s1 + $0x10] sm:$0xff]
    %v25 = vld [vmem:[%s1 + $0x18] sm:$0xff]
    %v26 = vld [vmem:[%s1 + $0x20] sm:$0xff]
    %v27 = vld [vmem:[%s1 + $0x28] sm:$0xff]
    %v28 = vld [vmem:[%s1 + $0x30] sm:$0xff]
    %v29 = vld [vmem:[%s1 + $0x38] sm:$0xff]
    %v30 = vld [vmem:[%s1 + $0x40] sm:$0xff]
    %v31 = vld [vmem:[%s1 + $0x48] sm:$0xff]
    %v32 = vld [vmem:[%s1 + $0x50] sm:$0xff]
    %v33 = vld [vmem:[%s1 + $0x58] sm:$0xff]
    %v34 = vld [vmem:[%s1 + $0x60] sm:$0xff]
    %v35 = vld [vmem:[%s1 + $0x68] sm:$0xff]
    %v36 = vld [vmem:[%s1 + $0x70] sm:$0xff]
    %v37 = vld [vmem:[%s1 + $0x78] sm:$0xff]
    %v38 = vld [vmem:[%s2] sm:$0x1]
    %v40 = vlaneseq
    %v41 = vshrl.u32 %v40, 7
    %v42 = vsub.s32 0, %v41
    %v43 = vrot.slane %v38, %v42
    %45 = vmatprep.subr.mxu0 0.0
    %46 = vmatpush1.msra.mxu0 %v37
    %47 = vmatprep.subr.mxu0 0.0
    %48 = vmatpush1.msra.mxu0 %v36
    %49 = vmatprep.subr.mxu0 0.0
    %50 = vmatpush1.msra.mxu0 %v35
    %51 = vmatprep.subr.mxu0 0.0
    %52 = vmatpush1.msra.mxu0 %v34
    %53 = vmatprep.subr.mxu0 0.0
    %54 = vmatpush1.msra.mxu0 %v33
    %55 = vmatprep.subr.mxu0 0.0
    %56 = vmatpush1.msra.mxu0 %v32
    %57 = vmatprep.subr.mxu0 0.0
    %58 = vmatpush1.msra.mxu0 %v31
    %59 = vmatprep.subr.mxu0 0.0
    %60 = vmatpush1.msra.mxu0 %v30
    %61 = vmatprep.subr.mxu0 0.0
    %62 = vmatpush1.msra.mxu0 %v29
    %63 = vmatprep.subr.mxu0 0.0
    %64 = vmatpush1.msra.mxu0 %v28
    %65 = vmatprep.subr.mxu0 0.0
    %66 = vmatpush1.msra.mxu0 %v27
    %67 = vmatprep.subr.mxu0 0.0
    %68 = vmatpush1.msra.mxu0 %v26
    %69 = vmatprep.subr.mxu0 0.0
    %70 = vmatpush1.msra.mxu0 %v25
    %71 = vmatprep.subr.mxu0 0.0
    %72 = vmatpush1.msra.mxu0 %v24
    %73 = vmatprep.subr.mxu0 0.0
    %74 = vmatpush1.msra.mxu0 %v23
    %75 = vmatprep.subr.mxu0 0.0
    %76 = vmatpush1.msra.mxu0 %v22
    %77 = vmatprep.subr.mxu0 0.0
    %78 = vmatpush2.msra.mxu0 0.0
    %79 = vmatprep.subr.mxu0 0.0
    %80 = vmatpush2.msra.mxu0 0.0
    %81 = vmatprep.subr.mxu0 0.0
    %82 = vmatpush2.msra.mxu0 0.0
    %83 = vmatprep.subr.mxu0 0.0
    %84 = vmatpush2.msra.mxu0 0.0
    %85 = vmatprep.subr.mxu0 0.0
    %86 = vmatpush2.msra.mxu0 0.0
    %87 = vmatprep.subr.mxu0 0.0
    %88 = vmatpush2.msra.mxu0 0.0
    %89 = vmatprep.subr.mxu0 0.0
    %90 = vmatpush2.msra.mxu0 0.0
    %91 = vmatprep.subr.mxu0 0.0
    %92 = vmatpush2.msra.mxu0 0.0
    %93 = vmatprep.subr.mxu0 0.0
    %94 = vmatpush2.msra.mxu0 0.0
    %95 = vmatprep.subr.mxu0 0.0
    %96 = vmatpush2.msra.mxu0 0.0
    %97 = vmatprep.subr.mxu0 0.0
    %98 = vmatpush2.msra.mxu0 0.0
    %99 = vmatprep.subr.mxu0 0.0
    %100 = vmatpush2.msra.mxu0 0.0
    %101 = vmatprep.subr.mxu0 0.0
    %102 = vmatpush2.msra.mxu0 0.0
    %103 = vmatprep.subr.mxu0 0.0
    %104 = vmatpush2.msra.mxu0 0.0
    %105 = vmatprep.subr.mxu0 0.0
    %106 = vmatpush2.msra.mxu0 0.0
    %107 = vmatprep.subr.mxu0 0.0
    %108 = vmatpush2.msra.mxu0 0.0
    %109 = vmatprep.mubr.f32.mxu0 0.0
    %110 = vmatmul.mubr.f32.gmra.mxu0 %v21
    %v111 = vpop.f32.mrf.mxu0
    %v112 = vadd.f32 %v43, %v111
    %v113 = vpop.f32.mrf.mxu0
    %114 = vdwg.mxu0
    %v115 = vmax.f32 %v112, 0.0
    %v116 = vld [vmem:[%s3] sm:$0xff]
    %v117 = vld [vmem:[%s3 + $0x8] sm:$0xff]
    %v118 = vld [vmem:[%s3 + $0x10] sm:$0xff]
    %v119 = vld [vmem:[%s3 + $0x18] sm:$0xff]
    %v120 = vld [vmem:[%s3 + $0x20] sm:$0xff]
    %v121 = vld [vmem:[%s3 + $0x28] sm:$0xff]
    %v122 = vld [vmem:[%s3 + $0x30] sm:$0xff]
    %v123 = vld [vmem:[%s3 + $0x38] sm:$0xff]
    %v124 = vld [vmem:[%s3 + $0x40] sm:$0xff]
    %v125 = vld [vmem:[%s3 + $0x48] sm:$0xff]
    %v126 = vld [vmem:[%s3 + $0x50] sm:$0xff]
    %v127 = vld [vmem:[%s3 + $0x58] sm:$0xff]
    %v128 = vld [vmem:[%s3 + $0x60] sm:$0xff]
    %v129 = vld [vmem:[%s3 + $0x68] sm:$0xff]
    %v130 = vld [vmem:[%s3 + $0x70] sm:$0xff]
    %v131 = vld [vmem:[%s3 + $0x78] sm:$0xff]
    %v132 = vld [vmem:[%s4] sm:$0x1]
    %v134 = vlaneseq
    %v135 = vshrl.u32 %v134, 7
    %v136 = vsub.s32 0, %v135
    %v137 = vrot.slane %v132, %v136
    %139 = vmatprep.subr.mxu0 0.0
    %140 = vmatpush1.msra.mxu0 %v131
    %141 = vmatprep.subr.mxu0 0.0
    %142 = vmatpush1.msra.mxu0 %v130
    %143 = vmatprep.subr.mxu0 0.0
    %144 = vmatpush1.msra.mxu0 %v129
    %145 = vmatprep.subr.mxu0 0.0
    %146 = vmatpush1.msra.mxu0 %v128
    %147 = vmatprep.subr.mxu0 0.0
    %148 = vmatpush1.msra.mxu0 %v127
    %149 = vmatprep.subr.mxu0 0.0
    %150 = vmatpush1.msra.mxu0 %v126
    %151 = vmatprep.subr.mxu0 0.0
    %152 = vmatpush1.msra.mxu0 %v125
    %153 = vmatprep.subr.mxu0 0.0
    %154 = vmatpush1.msra.mxu0 %v124
    %155 = vmatprep.subr.mxu0 0.0
    %156 = vmatpush1.msra.mxu0 %v123
    %157 = vmatprep.subr.mxu0 0.0
    %158 = vmatpush1.msra.mxu0 %v122
    %159 = vmatprep.subr.mxu0 0.0
    %160 = vmatpush1.msra.mxu0 %v121
    %161 = vmatprep.subr.mxu0 0.0
    %162 = vmatpush1.msra.mxu0 %v120
    %163 = vmatprep.subr.mxu0 0.0
    %164 = vmatpush1.msra.mxu0 %v119
    %165 = vmatprep.subr.mxu0 0.0
    %166 = vmatpush1.msra.mxu0 %v118
    %167 = vmatprep.subr.mxu0 0.0
    %168 = vmatpush1.msra.mxu0 %v117
    %169 = vmatprep.subr.mxu0 0.0
    %170 = vmatpush1.msra.mxu0 %v116
    %171 = vmatprep.subr.mxu0 0.0
    %172 = vmatpush2.msra.mxu0 0.0
    %173 = vmatprep.subr.mxu0 0.0
    %174 = vmatpush2.msra.mxu0 0.0
    %175 = vmatprep.subr.mxu0 0.0
    %176 = vmatpush2.msra.mxu0 0.0
    %177 = vmatprep.subr.mxu0 0.0
    %178 = vmatpush2.msra.mxu0 0.0
    %179 = vmatprep.subr.mxu0 0.0
    %180 = vmatpush2.msra.mxu0 0.0
    %181 = vmatprep.subr.mxu0 0.0
    %182 = vmatpush2.msra.mxu0 0.0
    %183 = vmatprep.subr.mxu0 0.0
    %184 = vmatpush2.msra.mxu0 0.0
    %185 = vmatprep.subr.mxu0 0.0
    %186 = vmatpush2.msra.mxu0 0.0
    %187 = vmatprep.subr.mxu0 0.0
    %188 = vmatpush2.msra.mxu0 0.0
    %189 = vmatprep.subr.mxu0 0.0
    %190 = vmatpush2.msra.mxu0 0.0
    %191 = vmatprep.subr.mxu0 0.0
    %192 = vmatpush2.msra.mxu0 0.0
    %193 = vmatprep.subr.mxu0 0.0
    %194 = vmatpush2.msra.mxu0 0.0
    %195 = vmatprep.subr.mxu0 0.0
    %196 = vmatpush2.msra.mxu0 0.0
    %197 = vmatprep.subr.mxu0 0.0
    %198 = vmatpush2.msra.mxu0 0.0
    %199 = vmatprep.subr.mxu0 0.0
    %200 = vmatpush2.msra.mxu0 0.0
    %201 = vmatprep.subr.mxu0 0.0
    %202 = vmatpush2.msra.mxu0 0.0
    %203 = vmatprep.mubr.f32.mxu0 0.0
    %204 = vmatmul.mubr.f32.gmra.mxu0 %v115
    %v205 = vpop.f32.mrf.mxu0
    %v206 = vadd.f32 %v137, %v205
    %v207 = vpop.f32.mrf.mxu0
    %208 = vdwg.mxu0
    %vm209 = vcmask 254976
    %210 = vst.msk [vmem:[#allocation2] sm:$0x3] %vm209, %v206
    // Predicated region
    $region22: #{tpu_custom_call.1} parent=1 // pred_check
      _
    $region23: #{tpu_custom_call.1} parent=1 // pred_check_branch
      %212 = sbr.rel (0) target = $region25
    $region24: #{tpu_custom_call.1} parent=1 // pred_region
      %s214 = ssub.s32 32, 32
      %215 = vsyncadd [#allocation3], %s214
      %s217 = sshll.u32 [#allocation2], 4
      %s218 = int_to_ptr.vmem [resolvable:$true] %s217
      %220 = dma.vmem_to_hbm [thread:$0]  %s218, 32, %s5, [#allocation3]
    $region25: #{tpu_custom_call.1} parent=1 // pred_fallthru
      _
    // Predicated region
    $region26: #{tpu_custom_call.1} parent=1 // pred_check
      _
    $region27: #{tpu_custom_call.1} parent=1 // pred_check_branch
      %222 = sbr.rel (0) target = $region29
    $region28: #{tpu_custom_call.1} parent=1 // pred_region
      %223 = dma.done [#allocation3], 32
    $region29: #{tpu_custom_call.1} parent=1 // pred_fallthru
      _
    %224 = vsyncpa [#allocation3], 1

// kernel: tpu_custom_call.1
$region0: #{tpu_custom_call.1}
  #allocation0 [shape = 'u32[]', space=smem, size = 0x4, offset = 0x4, fixed_abs, tag = 'smem constant byte address 0x4 - core index']
  #allocation1 [shape = 'u32[144,128]{1,0:T(1,128)}', space=vmem, size = 0x12000, scoped, tag = 'internal scratch']
  %s0 = inlined_call_operand.vmem [shape: f32[2,128], index: 0, kind: input, shape index: {}]
  %s1 = inlined_call_operand.vmem [shape: f32[128,128], index: 1, kind: input, shape index: {}]
  %s2 = inlined_call_operand.vmem [shape: f32[1,128], index: 2, kind: input, shape index: {}]
  %s3 = inlined_call_operand.vmem [shape: f32[128,32], index: 3, kind: input, shape index: {}]
  %s4 = inlined_call_operand.vmem [shape: f32[1,32], index: 4, kind: input, shape index: {}]
  %s5 = inlined_call_operand.hbm [shape: f32[2,32], index: 5, kind: output, shape index: {}]
  %s6 = sld [smem:[#allocation0]]
  $region30: #{tpu_custom_call.1} parent=0
    _
  %s8 = ssub.s32 1, %s6
  %s9 = scalar_select 0, %s8, %s6
  $region1: #{tpu_custom_call.1} parent=0
    #allocation2 [shape = 'u8[1024]{0}', space=vmem, size = 0x400, scoped, tag = 'output window, operand 0, single buffered']
    #allocation3 [shape = 's32[1]{0}', space=sflag, size = 0x4, scoped, tag = 'scoped memory for tpu_custom_call.1']
    %10 = vsyncpa [#allocation3], 0
    // Predicated region
    $region2: #{tpu_custom_call.1} parent=1 // pred_check
      _
    $region3: #{tpu_custom_call.1} parent=1 // pred_check_branch
      %12 = sbr.rel (0) target = $region5
    $region4: #{tpu_custom_call.1} parent=1 // pred_region
      _
    $region5: #{tpu_custom_call.1} parent=1 // pred_fallthru
      _
    // Predicated region
    $region6: #{tpu_custom_call.1} parent=1 // pred_check
      _
    $region7: #{tpu_custom_call.1} parent=1 // pred_check_branch
      %14 = sbr.rel (0) target = $region9
    $region8: #{tpu_custom_call.1} parent=1 // pred_region
      _
    $region9: #{tpu_custom_call.1} parent=1 // pred_fallthru
      _
    // Predicated region
    $region10: #{tpu_custom_call.1} parent=1 // pred_check
      _
    $region11: #{tpu_custom_call.1} parent=1 // pred_check_branch
      %16 = sbr.rel (0) target = $region13
    $region12: #{tpu_custom_call.1} parent=1 // pred_region
      _
    $region13: #{tpu_custom_call.1} parent=1 // pred_fallthru
      _
    // Predicated region
    $region14: #{tpu_custom_call.1} parent=1 // pred_check
      _
    $region15: #{tpu_custom_call.1} parent=1 // pred_check_branch
      %18 = sbr.rel (0) target = $region17
    $region16: #{tpu_custom_call.1} parent=1 // pred_region
      _
    $region17: #{tpu_custom_call.1} parent=1 // pred_fallthru
      _
    // Predicated region
    $region18: #{tpu_custom_call.1} parent=1 // pred_check
      _
    $region19: #{tpu_custom_call.1} parent=1 // pred_check_branch
      %20 = sbr.rel (0) target = $region21
    $region20: #{tpu_custom_call.1} parent=1 // pred_region
      _
    $region21: #{tpu_custom_call.1} parent=1 // pred_fallthru
      _
    %v21 = vld [vmem:[%s0] sm:$0x3]
    %v22 = vld [vmem:[%s1] sm:$0xff]
    %v23 = vld [vmem:[%s1 + $0x8] sm:$0xff]
    %v24 = vld [vmem:[%s1 + $0x10] sm:$0xff]
    %v25 = vld [vmem:[%s1 + $0x18] sm:$0xff]
    %v26 = vld [vmem:[%s1 + $0x20] sm:$0xff]
    %v27 = vld [vmem:[%s1 + $0x28] sm:$0xff]
    %v28 = vld [vmem:[%s1 + $0x30] sm:$0xff]
    %v29 = vld [vmem:[%s1 + $0x38] sm:$0xff]
    %v30 = vld [vmem:[%s1 + $0x40] sm:$0xff]
    %v31 = vld [vmem:[%s1 + $0x48] sm:$0xff]
    %v32 = vld [vmem:[%s1 + $0x50] sm:$0xff]
    %v33 = vld [vmem:[%s1 + $0x58] sm:$0xff]
    %v34 = vld [vmem:[%s1 + $0x60] sm:$0xff]
    %v35 = vld [vmem:[%s1 + $0x68] sm:$0xff]
    %v36 = vld [vmem:[%s1 + $0x70] sm:$0xff]
    %v37 = vld [vmem:[%s1 + $0x78] sm:$0xff]
    %v38 = vld [vmem:[%s2] sm:$0x1]
    %v40 = vlaneseq
    %v41 = vshrl.u32 %v40, 7
    %v42 = vsub.s32 0, %v41
    %v43 = vrot.slane %v38, %v42
    %45 = vmatprep.subr.mxu0 0.0
    %46 = vmatpush1.msra.mxu0 %v37
    %47 = vmatprep.subr.mxu0 0.0
    %48 = vmatpush1.msra.mxu0 %v36
    %49 = vmatprep.subr.mxu0 0.0
    %50 = vmatpush1.msra.mxu0 %v35
    %51 = vmatprep.subr.mxu0 0.0
    %52 = vmatpush1.msra.mxu0 %v34
    %53 = vmatprep.subr.mxu0 0.0
    %54 = vmatpush1.msra.mxu0 %v33
    %55 = vmatprep.subr.mxu0 0.0
    %56 = vmatpush1.msra.mxu0 %v32
    %57 = vmatprep.subr.mxu0 0.0
    %58 = vmatpush1.msra.mxu0 %v31
    %59 = vmatprep.subr.mxu0 0.0
    %60 = vmatpush1.msra.mxu0 %v30
    %61 = vmatprep.subr.mxu0 0.0
    %62 = vmatpush1.msra.mxu0 %v29
    %63 = vmatprep.subr.mxu0 0.0
    %64 = vmatpush1.msra.mxu0 %v28
    %65 = vmatprep.subr.mxu0 0.0
    %66 = vmatpush1.msra.mxu0 %v27
    %67 = vmatprep.subr.mxu0 0.0
    %68 = vmatpush1.msra.mxu0 %v26
    %69 = vmatprep.subr.mxu0 0.0
    %70 = vmatpush1.msra.mxu0 %v25
    %71 = vmatprep.subr.mxu0 0.0
    %72 = vmatpush1.msra.mxu0 %v24
    %73 = vmatprep.subr.mxu0 0.0
    %74 = vmatpush1.msra.mxu0 %v23
    %75 = vmatprep.subr.mxu0 0.0
    %76 = vmatpush1.msra.mxu0 %v22
    %77 = vmatprep.subr.mxu0 0.0
    %78 = vmatpush2.msra.mxu0 0.0
    %79 = vmatprep.subr.mxu0 0.0
    %80 = vmatpush2.msra.mxu0 0.0
    %81 = vmatprep.subr.mxu0 0.0
    %82 = vmatpush2.msra.mxu0 0.0
    %83 = vmatprep.subr.mxu0 0.0
    %84 = vmatpush2.msra.mxu0 0.0
    %85 = vmatprep.subr.mxu0 0.0
    %86 = vmatpush2.msra.mxu0 0.0
    %87 = vmatprep.subr.mxu0 0.0
    %88 = vmatpush2.msra.mxu0 0.0
    %89 = vmatprep.subr.mxu0 0.0
    %90 = vmatpush2.msra.mxu0 0.0
    %91 = vmatprep.subr.mxu0 0.0
    %92 = vmatpush2.msra.mxu0 0.0
    %93 = vmatprep.subr.mxu0 0.0
    %94 = vmatpush2.msra.mxu0 0.0
    %95 = vmatprep.subr.mxu0 0.0
    %96 = vmatpush2.msra.mxu0 0.0
    %97 = vmatprep.subr.mxu0 0.0
    %98 = vmatpush2.msra.mxu0 0.0
    %99 = vmatprep.subr.mxu0 0.0
    %100 = vmatpush2.msra.mxu0 0.0
    %101 = vmatprep.subr.mxu0 0.0
    %102 = vmatpush2.msra.mxu0 0.0
    %103 = vmatprep.subr.mxu0 0.0
    %104 = vmatpush2.msra.mxu0 0.0
    %105 = vmatprep.subr.mxu0 0.0
    %106 = vmatpush2.msra.mxu0 0.0
    %107 = vmatprep.subr.mxu0 0.0
    %108 = vmatpush2.msra.mxu0 0.0
    %109 = vmatprep.mubr.f32.mxu0 0.0
    %110 = vmatmul.mubr.f32.gmra.mxu0 %v21
    %v111 = vpop.f32.mrf.mxu0
    %v112 = vadd.f32 %v43, %v111
    %v113 = vpop.f32.mrf.mxu0
    %114 = vdwg.mxu0
    %v115 = vmax.f32 %v112, 0.0
    %v116 = vld [vmem:[%s3] sm:$0xff]
    %v117 = vld [vmem:[%s3 + $0x8] sm:$0xff]
    %v118 = vld [vmem:[%s3 + $0x10] sm:$0xff]
    %v119 = vld [vmem:[%s3 + $0x18] sm:$0xff]
    %v120 = vld [vmem:[%s3 + $0x20] sm:$0xff]
    %v121 = vld [vmem:[%s3 + $0x28] sm:$0xff]
    %v122 = vld [vmem:[%s3 + $0x30] sm:$0xff]
    %v123 = vld [vmem:[%s3 + $0x38] sm:$0xff]
    %v124 = vld [vmem:[%s3 + $0x40] sm:$0xff]
    %v125 = vld [vmem:[%s3 + $0x48] sm:$0xff]
    %v126 = vld [vmem:[%s3 + $0x50] sm:$0xff]
    %v127 = vld [vmem:[%s3 + $0x58] sm:$0xff]
    %v128 = vld [vmem:[%s3 + $0x60] sm:$0xff]
    %v129 = vld [vmem:[%s3 + $0x68] sm:$0xff]
    %v130 = vld [vmem:[%s3 + $0x70] sm:$0xff]
    %v131 = vld [vmem:[%s3 + $0x78] sm:$0xff]
    %v132 = vld [vmem:[%s4] sm:$0x1]
    %v134 = vlaneseq
    %v135 = vshrl.u32 %v134, 7
    %v136 = vsub.s32 0, %v135
    %v137 = vrot.slane %v132, %v136
    %139 = vmatprep.subr.mxu0 0.0
    %140 = vmatpush1.msra.mxu0 %v131
    %141 = vmatprep.subr.mxu0 0.0
    %142 = vmatpush1.msra.mxu0 %v130
    %143 = vmatprep.subr.mxu0 0.0
    %144 = vmatpush1.msra.mxu0 %v129
    %145 = vmatprep.subr.mxu0 0.0
    %146 = vmatpush1.msra.mxu0 %v128
    %147 = vmatprep.subr.mxu0 0.0
    %148 = vmatpush1.msra.mxu0 %v127
    %149 = vmatprep.subr.mxu0 0.0
    %150 = vmatpush1.msra.mxu0 %v126
    %151 = vmatprep.subr.mxu0 0.0
    %152 = vmatpush1.msra.mxu0 %v125
    %153 = vmatprep.subr.mxu0 0.0
    %154 = vmatpush1.msra.mxu0 %v124
    %155 = vmatprep.subr.mxu0 0.0
    %156 = vmatpush1.msra.mxu0 %v123
    %157 = vmatprep.subr.mxu0 0.0
    %158 = vmatpush1.msra.mxu0 %v122
    %159 = vmatprep.subr.mxu0 0.0
    %160 = vmatpush1.msra.mxu0 %v121
    %161 = vmatprep.subr.mxu0 0.0
    %162 = vmatpush1.msra.mxu0 %v120
    %163 = vmatprep.subr.mxu0 0.0
    %164 = vmatpush1.msra.mxu0 %v119
    %165 = vmatprep.subr.mxu0 0.0
    %166 = vmatpush1.msra.mxu0 %v118
    %167 = vmatprep.subr.mxu0 0.0
    %168 = vmatpush1.msra.mxu0 %v117
    %169 = vmatprep.subr.mxu0 0.0
    %170 = vmatpush1.msra.mxu0 %v116
    %171 = vmatprep.subr.mxu0 0.0
    %172 = vmatpush2.msra.mxu0 0.0
    %173 = vmatprep.subr.mxu0 0.0
    %174 = vmatpush2.msra.mxu0 0.0
    %175 = vmatprep.subr.mxu0 0.0
    %176 = vmatpush2.msra.mxu0 0.0
    %177 = vmatprep.subr.mxu0 0.0
    %178 = vmatpush2.msra.mxu0 0.0
    %179 = vmatprep.subr.mxu0 0.0
    %180 = vmatpush2.msra.mxu0 0.0
    %181 = vmatprep.subr.mxu0 0.0
    %182 = vmatpush2.msra.mxu0 0.0
    %183 = vmatprep.subr.mxu0 0.0
    %184 = vmatpush2.msra.mxu0 0.0
    %185 = vmatprep.subr.mxu0 0.0
    %186 = vmatpush2.msra.mxu0 0.0
    %187 = vmatprep.subr.mxu0 0.0
    %188 = vmatpush2.msra.mxu0 0.0
    %189 = vmatprep.subr.mxu0 0.0
    %190 = vmatpush2.msra.mxu0 0.0
    %191 = vmatprep.subr.mxu0 0.0
    %192 = vmatpush2.msra.mxu0 0.0
    %193 = vmatprep.subr.mxu0 0.0
    %194 = vmatpush2.msra.mxu0 0.0
    %195 = vmatprep.subr.mxu0 0.0
    %196 = vmatpush2.msra.mxu0 0.0
    %197 = vmatprep.subr.mxu0 0.0
    %198 = vmatpush2.msra.mxu0 0.0
    %199 = vmatprep.subr.mxu0 0.0
    %200 = vmatpush2.msra.mxu0 0.0
    %201 = vmatprep.subr.mxu0 0.0
    %202 = vmatpush2.msra.mxu0 0.0
    %203 = vmatprep.mubr.f32.mxu0 0.0
    %204 = vmatmul.mubr.f32.gmra.mxu0 %v115
    %v205 = vpop.f32.mrf.mxu0
    %v206 = vadd.f32 %v137, %v205
    %v207 = vpop.f32.mrf.mxu0
    %208 = vdwg.mxu0
    %vm209 = vcmask 254976
    %210 = vst.msk [vmem:[#allocation2] sm:$0x3] %vm209, %v206
    // Predicated region
    $region22: #{tpu_custom_call.1} parent=1 // pred_check
      _
    $region23: #{tpu_custom_call.1} parent=1 // pred_check_branch
      %212 = sbr.rel (0) target = $region25
    $region24: #{tpu_custom_call.1} parent=1 // pred_region
      %s214 = ssub.s32 32, 32
      %215 = vsyncadd [#allocation3], %s214
      %s217 = sshll.u32 [#allocation2], 4
      %s218 = int_to_ptr.vmem [resolvable:$true] %s217
      %220 = dma.vmem_to_hbm [thread:$0]  %s218, 32, %s5, [#allocation3]
    $region25: #{tpu_custom_call.1} parent=1 // pred_fallthru
      _
    // Predicated region
    $region26: #{tpu_custom_call.1} parent=1 // pred_check
      _
    $region27: #{tpu_custom_call.1} parent=1 // pred_check_branch
      %222 = sbr.rel (0) target = $region29
    $region28: #{tpu_custom_call.1} parent=1 // pred_region
      %223 = dma.done [#allocation3], 32
    $region29: #{tpu_custom_call.1} parent=1 // pred_fallthru
      _
    %224 = vsyncpa [#allocation3], 1

</llo_original>
